<compile_context>
chip_gen: v5e
topology: v5e:2x2
jax: 0.10.0
libtpu: 0.0.40
codegen_flags: <defaults>
</compile_context>

<pallas_src>
import jax
import jax.numpy as jnp
from jax.experimental import pallas as pl
from jax.experimental.pallas import tpu as pltpu

# ---- small, structure-consistent hyperparameters ----
C_IN = 4
SEQ_LEN = 8
TIME_WIN = 6          # time_win_len
FEATURE_DIM = 16
KSIZE = 3
N_HIDDEN = (64, 32)
C_OUT = 1
BN_EPS = 1e-5
B = 8

CS = C_IN * SEQ_LEN                       # 32  (x.reshape(B,-1) width)
TPAD = TIME_WIN + KSIZE - 1               # 8   (padded time length, 'same' conv)
D0 = CS + FEATURE_DIM * TIME_WIN          # 128 (original BN0 / Linear1 input width)
D_IN = CS + C_IN * TPAD                   # 64  (fused kernel input width)


# ---------------------------------------------------------------------------
# Kernel: relu(z @ W1 + b1) -> relu(. @ W2 + b2) -> sum(. * w3_row) + b3
# ---------------------------------------------------------------------------
def mlp_time_kernel(z_ref, w1_ref, b1_ref, w2_ref, b2_ref, w3_ref, b3_ref, o_ref):
    z = z_ref[...]                                                   # (tb, D_IN) f32
    h = jnp.dot(z, w1_ref[...], preferred_element_type=jnp.float32) + b1_ref[...]
    h = jnp.maximum(h, 0.0)
    h = jnp.dot(h, w2_ref[...], preferred_element_type=jnp.float32) + b2_ref[...]
    h = jnp.maximum(h, 0.0)
    # c_out == 1: VPU/XLU reduction instead of a 1-of-256-column MXU matmul.
    out = jnp.sum(h * w3_ref[...], axis=-1, keepdims=True) + b3_ref[...]
    o_ref[...] = out.astype(o_ref.dtype)


# ---------------------------------------------------------------------------
# One-time parameter preprocessing: fold conv (+bias) and eval-mode BNs.
# ---------------------------------------------------------------------------
def fold_params(p):
    def bn_affine(bn):
        g, b_, rm, rv = bn[0], bn[1], bn[2], bn[3]
        scale = g / jnp.sqrt(rv + BN_EPS)
        return scale, b_ - rm * scale

    s0, t0 = bn_affine(p['bn0'])
    s1, t1 = bn_affine(p['bn1'])
    s2, t2 = bn_affine(p['bn2'])

    wconv = p['wconv_torch']                      # (F, C, K)  PyTorch Conv1d layout
    bconv = p['bconv'].reshape(-1)                # (F,)

    # Conv as matmul on padded NCW time: wbig[(c,j),(f,t)] = wconv[f,c,k] iff j == t+k.
    wbig = jnp.zeros((C_IN, TPAD, FEATURE_DIM, TIME_WIN), jnp.float32)
    for k in range(KSIZE):
        sel = jnp.eye(TPAD, TIME_WIN, k=-k, dtype=jnp.float32)       # sel[j,t] = (j == t+k)
        wbig = wbig + jnp.einsum('fc,jt->cjft', wconv[:, :, k], sel)
    wbig = wbig.reshape(C_IN * TPAD, FEATURE_DIM * TIME_WIN)         # (32, 96)
    bconv_flat = jnp.repeat(bconv, TIME_WIN)                         # f-major flatten (96,)

    w1 = p['w1']                                                     # (D0, H1)
    w1s = s0[:, None] * w1                                           # BN0 folded into W1
    wf1 = jnp.concatenate([w1s[:CS], wbig @ w1s[CS:]], axis=0)       # (D_IN, H1)
    bf1 = t0 @ w1 + bconv_flat @ w1s[CS:]                            # (H1,)

    wf2 = s1[:, None] * p['w2']                                      # BN1 folded into W2
    bf2 = t1 @ p['w2']

    wf3 = s2[:, None] * p['w3']                                      # BN2 folded into W3
    bf3 = t2 @ p['w3'] + p['b3'].reshape(-1)                         # (1,)

    return {
        'w1': wf1, 'b1': bf1.reshape(1, -1),
        'w2': wf2, 'b2': bf2.reshape(1, -1),
        'w3': wf3.T,                       # (1, H2) row for the final VPU reduction
        'b3': bf3.reshape(1, 1),
    }


# ---------------------------------------------------------------------------
# Forward wrapper: input layout plumbing + batch-tiled pallas_call.
# ---------------------------------------------------------------------------
@jax.jit
def mlp_time_forward(x, time, fp):
    Bn = x.shape[0]
    x_flat = x.reshape(Bn, -1).astype(jnp.float32)                   # x.reshape(B, -1)
    t_ncw = jnp.transpose(time, (0, 2, 1))                           # time.permute(0,-1,-2)
    pad_l = (KSIZE - 1) // 2
    pad_r = KSIZE - 1 - pad_l
    t_pad = jnp.pad(t_ncw, ((0, 0), (0, 0), (pad_l, pad_r)))         # padding='same'
    zin = jnp.concatenate(
        [x_flat, t_pad.reshape(Bn, -1).astype(jnp.float32)], axis=1)  # (B, D_IN) lane-dense

    # Batch tiling: trivial (grid of 1) at small B, scales to big batches.
    tb = Bn if Bn <= 256 else 256
    Bp = -(-Bn // tb) * tb
    if Bp != Bn:
        zin = jnp.pad(zin, ((0, Bp - Bn), (0, 0)))

    full = lambda shape: pl.BlockSpec(shape, lambda i: (0, 0))
    out = pl.pallas_call(
        mlp_time_kernel,
        out_shape=jax.ShapeDtypeStruct((Bp, C_OUT), jnp.float32),
        grid=(Bp // tb,),
        in_specs=[
            pl.BlockSpec((tb, D_IN), lambda i: (i, 0)),
            full(fp['w1'].shape), full(fp['b1'].shape),
            full(fp['w2'].shape), full(fp['b2'].shape),
            full(fp['w3'].shape), full(fp['b3'].shape),
        ],
        out_specs=pl.BlockSpec((tb, C_OUT), lambda i: (i, 0)),
        compiler_params=pltpu.CompilerParams(dimension_semantics=("parallel",)),
    )(zin, fp['w1'], fp['b1'], fp['w2'], fp['b2'], fp['w3'], fp['b3'])
    return out[:Bn]


# ---------------------------------------------------------------------------
# Raw (unfolded) params + plain-JAX reference for validation.
# ---------------------------------------------------------------------------
def init_params(key):
    ks = jax.random.split(key, 9)
    wconv = jax.random.normal(ks[0], (FEATURE_DIM, C_IN, KSIZE), jnp.float32) * 0.1
    bconv = jax.random.normal(ks[1], (FEATURE_DIM,), jnp.float32) * 0.1
    w1 = jax.random.normal(ks[2], (D0, N_HIDDEN[0]), jnp.float32) / jnp.sqrt(D0)
    w2 = jax.random.normal(ks[3], (N_HIDDEN[0], N_HIDDEN[1]), jnp.float32) / jnp.sqrt(N_HIDDEN[0])
    w3 = jax.random.normal(ks[4], (N_HIDDEN[1], C_OUT), jnp.float32) / jnp.sqrt(N_HIDDEN[1])
    b3 = jax.random.normal(ks[5], (C_OUT,), jnp.float32) * 0.1

    def bn_params(d, k):
        kg, kb, km, kv = jax.random.split(k, 4)
        g = 1.0 + 0.1 * jax.random.normal(kg, (d,), jnp.float32)
        b_ = 0.1 * jax.random.normal(kb, (d,), jnp.float32)
        rm = 0.1 * jax.random.normal(km, (d,), jnp.float32)
        rv = 1.0 + 0.2 * jax.random.uniform(kv, (d,), jnp.float32)
        return jnp.stack([g, b_, rm, rv])   # rows: [gamma, beta, running_mean, running_var]

    return {
        'wconv_torch': wconv, 'bconv': bconv,
        'bn0': bn_params(D0, ks[6]),
        'bn1': bn_params(N_HIDDEN[0], ks[7]),
        'bn2': bn_params(N_HIDDEN[1], ks[8]),
        'w1': w1, 'w2': w2, 'w3': w3, 'b3': b3,
    }


def reference_forward(x, time, params):
    """Plain-JAX mirror of MLP_Time.forward (eval mode), unfolded parameters."""
    Bn = x.shape[0]
    xf = x.reshape(Bn, -1)
    t_ncw = jnp.transpose(time, (0, 2, 1))
    pad_l = (KSIZE - 1) // 2
    t_pad = jnp.pad(t_ncw, ((0, 0), (0, 0), (pad_l, KSIZE - 1 - pad_l)))
    W = params['wconv_torch']                                        # (F, C, K)
    feat = jnp.zeros((Bn, FEATURE_DIM, TIME_WIN), jnp.float32)
    for k in range(KSIZE):
        feat = feat + jnp.einsum('fc,bct->bft', W[:, :, k], t_pad[:, :, k:k + TIME_WIN])
    feat = feat + params['bconv'].reshape(1, FEATURE_DIM, 1)
    z = jnp.concatenate([xf, feat.reshape(Bn, -1)], axis=1)

    def bn(v, p):
        g, b_, rm, rv = p
        return (v - rm) * g / jnp.sqrt(rv + BN_EPS) + b_

    z = bn(z, params['bn0'])
    h = bn(jnp.maximum(z @ params['w1'], 0.0), params['bn1'])
    h = bn(jnp.maximum(h @ params['w2'], 0.0), params['bn2'])
    return h @ params['w3'] + params['b3'].reshape(1, -1)


if __name__ == "__main__":
    key = jax.random.PRNGKey(0)
    kx, kt, kp = jax.random.split(key, 3)
    x = jax.random.normal(kx, (B, C_IN, SEQ_LEN), jnp.float32)
    time = jax.random.normal(kt, (B, TIME_WIN, C_IN), jnp.float32)
    params = init_params(kp)
    folded = fold_params(params)      # one-time parameter preprocessing

    out = mlp_time_forward(x, time, folded)
    jax.block_until_ready(out)

    ref = reference_forward(x, time, params)
    assert out.shape == (B, C_OUT), out.shape
    assert jnp.allclose(out, ref, atol=5e-4, rtol=5e-4), (out, ref)
    print("KERNEL_OK")
</pallas_src>

<mosaic_0001>
module attributes {stable_mosaic.version = 11 : i64} {
  func.func @mlp_time_kernel(%arg0: i32, %arg1: memref<8x64xf32, #tpu.memory_space<vmem>>, %arg2: memref<64x64xf32, #tpu.memory_space<vmem>>, %arg3: memref<1x64xf32, #tpu.memory_space<vmem>>, %arg4: memref<64x32xf32, #tpu.memory_space<vmem>>, %arg5: memref<1x32xf32, #tpu.memory_space<vmem>>, %arg6: memref<1x32xf32, #tpu.memory_space<vmem>>, %arg7: memref<1x1xf32, #tpu.memory_space<vmem>>, %arg8: memref<8x1xf32, #tpu.memory_space<vmem>>) attributes {dimension_semantics = [#tpu.dimension_semantics<parallel>], iteration_bounds = array<i64: 1>, scalar_prefetch = 0 : i64, scratch_operands = 0 : i64, tpu.core_type = #tpu.core_type<tc>, window_params = [{transform_indices = @transform_0, window_bounds = array<i64: 8, 64>}, {pipeline_mode = #tpu.pipeline_mode<synchronous>, transform_indices = @transform_1, window_bounds = array<i64: 64, 64>}, {pipeline_mode = #tpu.pipeline_mode<synchronous>, transform_indices = @transform_2, window_bounds = array<i64: 1, 64>}, {pipeline_mode = #tpu.pipeline_mode<synchronous>, transform_indices = @transform_3, window_bounds = array<i64: 64, 32>}, {pipeline_mode = #tpu.pipeline_mode<synchronous>, transform_indices = @transform_4, window_bounds = array<i64: 1, 32>}, {pipeline_mode = #tpu.pipeline_mode<synchronous>, transform_indices = @transform_5, window_bounds = array<i64: 1, 32>}, {pipeline_mode = #tpu.pipeline_mode<synchronous>, transform_indices = @transform_6, window_bounds = array<i64: 1, 1>}, {transform_indices = @transform_7, window_bounds = array<i64: 8, 1>}]} {
    %c0 = arith.constant 0 : index
    %c0_0 = arith.constant 0 : index
    %0 = vector.load %arg1[%c0, %c0_0] : memref<8x64xf32, #tpu.memory_space<vmem>>, vector<8x64xf32>
    %c0_1 = arith.constant 0 : index
    %c0_2 = arith.constant 0 : index
    %1 = vector.load %arg2[%c0_1, %c0_2] : memref<64x64xf32, #tpu.memory_space<vmem>>, vector<64x64xf32>
    %cst = arith.constant dense<0.000000e+00> : vector<8x64xf32>
    %2 = tpu.matmul %0, %1, %cst {dimension_numbers = #tpu.dot_dimension_numbers<[1], [0], [0], [1], [0, 0, 1, 1], [], []>} : vector<8x64xf32>, vector<64x64xf32>, vector<8x64xf32> -> vector<8x64xf32>
    %c0_3 = arith.constant 0 : index
    %c0_4 = arith.constant 0 : index
    %3 = vector.load %arg3[%c0_3, %c0_4] : memref<1x64xf32, #tpu.memory_space<vmem>>, vector<1x64xf32>
    %4 = vector.broadcast %3 : vector<1x64xf32> to vector<8x64xf32>
    %5 = arith.addf %2, %4 : vector<8x64xf32>
    %cst_5 = arith.constant 0.000000e+00 : f32
    %6 = vector.broadcast %cst_5 : f32 to vector<8x64xf32>
    %7 = arith.maximumf %5, %6 : vector<8x64xf32>
    %c0_6 = arith.constant 0 : index
    %c0_7 = arith.constant 0 : index
    %8 = vector.load %arg4[%c0_6, %c0_7] : memref<64x32xf32, #tpu.memory_space<vmem>>, vector<64x32xf32>
    %cst_8 = arith.constant dense<0.000000e+00> : vector<8x32xf32>
    %9 = tpu.matmul %7, %8, %cst_8 {dimension_numbers = #tpu.dot_dimension_numbers<[1], [0], [0], [1], [0, 0, 1, 1], [], []>} : vector<8x64xf32>, vector<64x32xf32>, vector<8x32xf32> -> vector<8x32xf32>
    %c0_9 = arith.constant 0 : index
    %c0_10 = arith.constant 0 : index
    %10 = vector.load %arg5[%c0_9, %c0_10] : memref<1x32xf32, #tpu.memory_space<vmem>>, vector<1x32xf32>
    %11 = vector.broadcast %10 : vector<1x32xf32> to vector<8x32xf32>
    %12 = arith.addf %9, %11 : vector<8x32xf32>
    %cst_11 = arith.constant 0.000000e+00 : f32
    %13 = vector.broadcast %cst_11 : f32 to vector<8x32xf32>
    %14 = arith.maximumf %12, %13 : vector<8x32xf32>
    %c0_12 = arith.constant 0 : index
    %c0_13 = arith.constant 0 : index
    %15 = vector.load %arg6[%c0_12, %c0_13] : memref<1x32xf32, #tpu.memory_space<vmem>>, vector<1x32xf32>
    %16 = vector.broadcast %15 : vector<1x32xf32> to vector<8x32xf32>
    %17 = arith.mulf %14, %16 : vector<8x32xf32>
    %cst_14 = arith.constant dense<0.000000e+00> : vector<8xf32>
    %18 = vector.multi_reduction <add>, %17, %cst_14 [1] : vector<8x32xf32> to vector<8xf32>
    %19 = vector.shape_cast %18 : vector<8xf32> to vector<8x1xf32>
    %c0_15 = arith.constant 0 : index
    %c0_16 = arith.constant 0 : index
    %20 = vector.load %arg7[%c0_15, %c0_16] : memref<1x1xf32, #tpu.memory_space<vmem>>, vector<1x1xf32>
    %21 = vector.broadcast %20 : vector<1x1xf32> to vector<8x1xf32>
    %22 = arith.addf %19, %21 : vector<8x1xf32>
    %c0_17 = arith.constant 0 : index
    %c0_18 = arith.constant 0 : index
    %23 = vector.load %arg8[%c0_17, %c0_18] : memref<8x1xf32, #tpu.memory_space<vmem>>, vector<8x1xf32>
    tpu.vector_store %arg8[%c0_17, %c0_18], %22 {strides = array<i32>} : memref<8x1xf32, #tpu.memory_space<vmem>>, vector<8x1xf32>,
    return
  }
  func.func @transform_0(%arg0: i32) -> (i32, i32) {
    %c0_i32 = arith.constant 0 : i32
    %c0_i32_0 = arith.constant 0 : i32
    return %arg0, %c0_i32 : i32, i32
  }
  func.func @transform_1(%arg0: i32) -> (i32, i32) {
    %c0_i32 = arith.constant 0 : i32
    %c0_i32_0 = arith.constant 0 : i32
    %c0_i32_1 = arith.constant 0 : i32
    return %c0_i32, %c0_i32_0 : i32, i32
  }
  func.func @transform_2(%arg0: i32) -> (i32, i32) {
    %c0_i32 = arith.constant 0 : i32
    %c0_i32_0 = arith.constant 0 : i32
    %c0_i32_1 = arith.constant 0 : i32
    return %c0_i32, %c0_i32_0 : i32, i32
  }
  func.func @transform_3(%arg0: i32) -> (i32, i32) {
    %c0_i32 = arith.constant 0 : i32
    %c0_i32_0 = arith.constant 0 : i32
    %c0_i32_1 = arith.constant 0 : i32
    return %c0_i32, %c0_i32_0 : i32, i32
  }
  func.func @transform_4(%arg0: i32) -> (i32, i32) {
    %c0_i32 = arith.constant 0 : i32
    %c0_i32_0 = arith.constant 0 : i32
    %c0_i32_1 = arith.constant 0 : i32
    return %c0_i32, %c0_i32_0 : i32, i32
  }
  func.func @transform_5(%arg0: i32) -> (i32, i32) {
    %c0_i32 = arith.constant 0 : i32
    %c0_i32_0 = arith.constant 0 : i32
    %c0_i32_1 = arith.constant 0 : i32
    return %c0_i32, %c0_i32_0 : i32, i32
  }
  func.func @transform_6(%arg0: i32) -> (i32, i32) {
    %c0_i32 = arith.constant 0 : i32
    %c0_i32_0 = arith.constant 0 : i32
    %c0_i32_1 = arith.constant 0 : i32
    return %c0_i32, %c0_i32_0 : i32, i32
  }
  func.func @transform_7(%arg0: i32) -> (i32, i32) {
    %c0_i32 = arith.constant 0 : i32
    %c0_i32_0 = arith.constant 0 : i32
    return %arg0, %c0_i32 : i32, i32
  }
}

</mosaic_0001>

<llo_original>
// kernel: mlp_time_forward.1
$region0: #{mlp_time_forward.1}
  #allocation0 [shape = 'u32[]', space=smem, size = 0x4, offset = 0x4, fixed_abs, tag = 'smem constant byte address 0x4 - core index']
  #allocation1 [shape = 'u32[72,128]{1,0:T(1,128)}', space=vmem, size = 0x9000, scoped, tag = 'internal scratch']
  #allocation2 [shape = 'f32[1,1]{1,0:T(1,128)S(1)}', space=vmem, size = 0x200, scoped, tag = 'scoped memory for mlp_time_forward.1']
  %s0 = inlined_call_operand.vmem [shape: f32[8,64], index: 0, kind: input, shape index: {}]
  %s1 = inlined_call_operand.vmem [shape: f32[64,64], index: 1, kind: input, shape index: {}]
  %s2 = inlined_call_operand.vmem [shape: f32[1,64], index: 2, kind: input, shape index: {}]
  %s3 = inlined_call_operand.vmem [shape: f32[64,32], index: 3, kind: input, shape index: {}]
  %s4 = inlined_call_operand.vmem [shape: f32[1,32], index: 4, kind: input, shape index: {}]
  %s5 = inlined_call_operand.vmem [shape: f32[1,32], index: 5, kind: input, shape index: {}]
  %s6 = inlined_call_operand.<no memory space> [shape: f32[1,1], index: 6, kind: input, shape index: {}]
  %s7 = inlined_call_operand.vmem [shape: f32[8,1], index: 7, kind: output, shape index: {}]
  %s8 = sld [smem:[#allocation0]]
  $region38: #{mlp_time_forward.1} parent=0
    _
  %s10 = ssub.s32 1, %s8
  %s11 = scalar_select 0, %s10, %s8
  %v12 = vstv %s6
  %13 = vst [vmem:[#allocation2] sm:$0x1] %v12
  // Predicated region
  $region2: #{mlp_time_forward.1} parent=0 // pred_check
    _
  $region3: #{mlp_time_forward.1} parent=0 // pred_check_branch
    %15 = sbr.rel (0) target = $region5
  $region4: #{mlp_time_forward.1} parent=0 // pred_region
    _
  $region5: #{mlp_time_forward.1} parent=0 // pred_fallthru
    _
  // Predicated region
  $region6: #{mlp_time_forward.1} parent=0 // pred_check
    _
  $region7: #{mlp_time_forward.1} parent=0 // pred_check_branch
    %17 = sbr.rel (0) target = $region9
  $region8: #{mlp_time_forward.1} parent=0 // pred_region
    _
  $region9: #{mlp_time_forward.1} parent=0 // pred_fallthru
    _
  // Predicated region
  $region10: #{mlp_time_forward.1} parent=0 // pred_check
    _
  $region11: #{mlp_time_forward.1} parent=0 // pred_check_branch
    %19 = sbr.rel (0) target = $region13
  $region12: #{mlp_time_forward.1} parent=0 // pred_region
    _
  $region13: #{mlp_time_forward.1} parent=0 // pred_fallthru
    _
  // Predicated region
  $region14: #{mlp_time_forward.1} parent=0 // pred_check
    _
  $region15: #{mlp_time_forward.1} parent=0 // pred_check_branch
    %21 = sbr.rel (0) target = $region17
  $region16: #{mlp_time_forward.1} parent=0 // pred_region
    _
  $region17: #{mlp_time_forward.1} parent=0 // pred_fallthru
    _
  // Predicated region
  $region18: #{mlp_time_forward.1} parent=0 // pred_check
    _
  $region19: #{mlp_time_forward.1} parent=0 // pred_check_branch
    %23 = sbr.rel (0) target = $region21
  $region20: #{mlp_time_forward.1} parent=0 // pred_region
    _
  $region21: #{mlp_time_forward.1} parent=0 // pred_fallthru
    _
  // Predicated region
  $region22: #{mlp_time_forward.1} parent=0 // pred_check
    _
  $region23: #{mlp_time_forward.1} parent=0 // pred_check_branch
    %25 = sbr.rel (0) target = $region25
  $region24: #{mlp_time_forward.1} parent=0 // pred_region
    _
  $region25: #{mlp_time_forward.1} parent=0 // pred_fallthru
    _
  // Predicated region
  $region26: #{mlp_time_forward.1} parent=0 // pred_check
    _
  $region27: #{mlp_time_forward.1} parent=0 // pred_check_branch
    %27 = sbr.rel (0) target = $region29
  $region28: #{mlp_time_forward.1} parent=0 // pred_region
    _
  $region29: #{mlp_time_forward.1} parent=0 // pred_fallthru
    _
  %v28 = vld [vmem:[%s0] sm:$0xff]
  %v29 = vld [vmem:[%s1] sm:$0xff]
  %v30 = vld [vmem:[%s1 + $0x8] sm:$0xff]
  %v31 = vld [vmem:[%s1 + $0x10] sm:$0xff]
  %v32 = vld [vmem:[%s1 + $0x18] sm:$0xff]
  %v33 = vld [vmem:[%s1 + $0x20] sm:$0xff]
  %v34 = vld [vmem:[%s1 + $0x28] sm:$0xff]
  %v35 = vld [vmem:[%s1 + $0x30] sm:$0xff]
  %v36 = vld [vmem:[%s1 + $0x38] sm:$0xff]
  %v37 = vld [vmem:[%s2] sm:$0x1]
  %v39 = vperm.slane %v37, 0
  %vm41 = vcmask 523264
  %v43 = vsel %vm41, %v28, 0
  %45 = vmatpush.msra.mxu0 0.0
  %46 = vmatpush.msra.mxu0 0.0
  %47 = vmatpush.msra.mxu0 0.0
  %48 = vmatpush.msra.mxu0 0.0
  %49 = vmatpush.msra.mxu0 0.0
  %50 = vmatpush.msra.mxu0 0.0
  %51 = vmatpush.msra.mxu0 0.0
  %52 = vmatpush.msra.mxu0 0.0
  %53 = vmatpush.msra.mxu0 %v36
  %54 = vmatpush.msra.mxu0 %v35
  %55 = vmatpush.msra.mxu0 %v34
  %56 = vmatpush.msra.mxu0 %v33
  %57 = vmatpush.msra.mxu0 %v32
  %58 = vmatpush.msra.mxu0 %v31
  %59 = vmatpush.msra.mxu0 %v30
  %60 = vmatpush.msra.mxu0 %v29
  %61 = vmatmul.f32.gmra.mxu0 %v43
  %v62 = vpop.f32.mrf.mxu0
  %v63 = vadd.f32 %v39, %v62
  %64 = vdwg.mxu0
  %v65 = vmax.f32 %v63, 0.0
  %v66 = vld [vmem:[%s3] sm:$0xff]
  %v67 = vld [vmem:[%s3 + $0x8] sm:$0xff]
  %v68 = vld [vmem:[%s3 + $0x10] sm:$0xff]
  %v69 = vld [vmem:[%s3 + $0x18] sm:$0xff]
  %v70 = vld [vmem:[%s3 + $0x20] sm:$0xff]
  %v71 = vld [vmem:[%s3 + $0x28] sm:$0xff]
  %v72 = vld [vmem:[%s3 + $0x30] sm:$0xff]
  %v73 = vld [vmem:[%s3 + $0x38] sm:$0xff]
  %v74 = vld [vmem:[%s4] sm:$0x1]
  %v76 = vperm.slane %v74, 0
  %v79 = vsel %vm41, %v65, 0
  %81 = vmatpush.msra.mxu0 0.0
  %82 = vmatpush.msra.mxu0 0.0
  %83 = vmatpush.msra.mxu0 0.0
  %84 = vmatpush.msra.mxu0 0.0
  %85 = vmatpush.msra.mxu0 0.0
  %86 = vmatpush.msra.mxu0 0.0
  %87 = vmatpush.msra.mxu0 0.0
  %88 = vmatpush.msra.mxu0 0.0
  %89 = vmatpush.msra.mxu0 %v73
  %90 = vmatpush.msra.mxu0 %v72
  %91 = vmatpush.msra.mxu0 %v71
  %92 = vmatpush.msra.mxu0 %v70
  %93 = vmatpush.msra.mxu0 %v69
  %94 = vmatpush.msra.mxu0 %v68
  %95 = vmatpush.msra.mxu0 %v67
  %96 = vmatpush.msra.mxu0 %v66
  %97 = vmatmul.f32.gmra.mxu0 %v79
  %v98 = vpop.f32.mrf.mxu0
  %v99 = vadd.f32 %v76, %v98
  %100 = vdwg.mxu0
  %v101 = vmax.f32 %v99, 0.0
  %v102 = vld [vmem:[%s5] sm:$0x1]
  %v104 = vperm.slane %v102, 0
  %v106 = vmul.f32 %v101, %v104
  %vm107 = vcmask 261120
  %v108 = vsel %vm107, %v106, 0.0
  %109 = vadd.xlane.f32.xlu0 %v108
  %v110 = vpop.xlane.xlu0 %109
  %v111 = vld [vmem:[#allocation2] sm:$0x1]
  %v113 = vperm.slane %v111, 0
  %v115 = vadd.f32 %v110, %v113
  %vm116 = vcmask 7168
  %117 = vst.msk [vmem:[%s7] sm:$0xff] %vm116, %v115
  // Predicated region
  $region30: #{mlp_time_forward.1} parent=0 // pred_check
    _
  $region31: #{mlp_time_forward.1} parent=0 // pred_check_branch
    %119 = sbr.rel (0) target = $region33
  $region32: #{mlp_time_forward.1} parent=0 // pred_region
    _
  $region33: #{mlp_time_forward.1} parent=0 // pred_fallthru
    _
  // Predicated region
  $region34: #{mlp_time_forward.1} parent=0 // pred_check
    _
  $region35: #{mlp_time_forward.1} parent=0 // pred_check_branch
    %121 = sbr.rel (0) target = $region37
  $region36: #{mlp_time_forward.1} parent=0 // pred_region
    _
  $region37: #{mlp_time_forward.1} parent=0 // pred_fallthru
    _

</llo_original>
